<compile_context>
chip_gen: v7x
topology: tpu7x:2x2x1
jax: 0.10.0
libtpu: 0.0.40
codegen_flags: <defaults>
</compile_context>

<pallas_src>
import functools
import math

import jax
import jax.numpy as jnp
from jax import lax
from jax.experimental import pallas as pl
from jax.experimental.pallas import tpu as pltpu


def _round_up(x, m):
    return ((x + m - 1) // m) * m


def _vmem_capacity_bytes():
    """Per-TensorCore VMEM capacity (generation-aware) with a safe fallback."""
    try:
        return int(pltpu.get_tpu_info().vmem_capacity_bytes)
    except Exception:
        return 64 << 20  # conservative: v7x has 64 MiB per TensorCore


def _pick_tile(n):
    """Token-tile size: prefer a tile that divides n (no padding / post-slice)."""
    if n <= 256:
        return _round_up(max(n, 8), 8)
    for t in (256, 128, 64):
        if n % t == 0:
            return t
    return 256


# ---------------------------------------------------------------------------
# Path A (main): one-hot MXU gather, table VMEM-resident.
# ---------------------------------------------------------------------------
def _embed_onehot_kernel(ids_ref, table_ref, out_ref, *, scale):
    """ids_ref: (tq,1) int32 VMEM; table_ref: (V,D) VMEM; out_ref: (tq,D)."""
    ids = ids_ref[...]                                      # (tq, 1) int32
    tq = ids.shape[0]
    v = table_ref.shape[0]
    iota = lax.broadcasted_iota(jnp.int32, (tq, v), 1)
    onehot = (iota == ids).astype(table_ref.dtype)          # exact 0/1
    rows = jnp.dot(onehot, table_ref[...], preferred_element_type=jnp.float32)
    # Scale applied once in f32 on the full tile (cheap VPU filler).
    out_ref[...] = (rows * scale).astype(out_ref.dtype)
    # Dropout is identity in eval mode (matches nn.Dropout at inference).
    # TODO(synk): training-mode dropout would use pltpu.prng_seed +
    #             pltpu.stateful_bernoulli; omitted for deterministic eval.


# ---------------------------------------------------------------------------
# Path B: large-V table that still fits VMEM -> per-row copy, tile-wide scale.
# ---------------------------------------------------------------------------
def _embed_rows_vmem_kernel(ids_ref, table_ref, out_ref, *, tq, scale):
    """ids_ref: (n_pad,) int32 SMEM (scalar prefetch); table_ref: (V,D) VMEM."""
    base = pl.multiple_of(pl.program_id(0) * tq, tq)

    def body(t, carry):
        row_idx = ids_ref[base + t]                         # scalar SMEM read
        out_ref[pl.ds(t, 1), :] = table_ref[pl.ds(row_idx, 1), :]
        return carry

    lax.fori_loop(0, tq, body, 0, unroll=8)
    # Single full-tile scale (full 8x128 vreg occupancy) instead of per-row.
    out_ref[...] = (out_ref[...] * scale).astype(out_ref.dtype)


# ---------------------------------------------------------------------------
# Path C: table too large for VMEM -> batched, overlapped HBM row gather.
# ---------------------------------------------------------------------------
_DMA_DEPTH = 8  # rows kept in flight per grid step


def _embed_hbm_gather_kernel(ids_ref, table_hbm, out_ref, rows, sems, *, tq, scale):
    """ids_ref: (n_pad,) int32 SMEM; table_hbm: (V,D) HBM/ANY; rows: (tq,D) VMEM."""
    base = pl.program_id(0) * tq

    def start(t):
        row_idx = ids_ref[base + t]
        pltpu.make_async_copy(
            table_hbm.at[row_idx], rows.at[t], sems.at[t % _DMA_DEPTH]
        ).start()

    def wait(t):
        # Descriptor only needs matching shapes for the wait (paged-attn pattern).
        pltpu.make_async_copy(
            table_hbm.at[0], rows.at[t], sems.at[t % _DMA_DEPTH]
        ).wait()

    def prime(t, c):
        start(t)
        return c

    lax.fori_loop(0, min(_DMA_DEPTH, tq), prime, 0)

    def step(t, c):
        wait(t)

        @pl.when(t + _DMA_DEPTH < tq)
        def _():
            start(t + _DMA_DEPTH)

        return c

    lax.fori_loop(0, tq, step, 0)
    # One lane-dense scaled store for the whole tile.
    out_ref[...] = (rows[...] * scale).astype(out_ref.dtype)


# ---------------------------------------------------------------------------
# Wrapper
# ---------------------------------------------------------------------------
def embedding_layer_forward(token_ids, embed_table, *,
                            vmem_budget_bytes=None, onehot_max_vocab=2048):
    """token_ids: (B, S) int -> (B, S, D) in embed_table.dtype."""
    B, S = token_ids.shape
    V, D = embed_table.shape
    N = B * S
    scale = float(math.sqrt(float(D)))

    # Clamp ids so a bad id can never become an OOB VMEM read / HBM DMA.
    # NOTE: diverges from PyTorch nn.Embedding, which raises on OOB ids.
    flat_ids = jnp.clip(token_ids.reshape(N).astype(jnp.int32), 0, V - 1)

    itemsize = jnp.dtype(embed_table.dtype).itemsize
    table_bytes = V * D * itemsize

    capacity = _vmem_capacity_bytes()
    if vmem_budget_bytes is None:
        # 40% of per-core VMEM for the table: leaves room for a (worst-case)
        # second pipeline buffer of the block-invariant table plus the
        # double-buffered ids/output tiles.  Note each TensorCore holds its own
        # copy under dimension_semantics=("parallel",), so budget per-TC.
        # TODO(synk): force single-buffering of the table (pl.Buffered(1)) and
        #             raise this fraction to ~75% of capacity.
        vmem_budget_bytes = int(0.40 * capacity)

    tq = _pick_tile(N)
    n_pad = _round_up(N, tq)
    padded = n_pad != N

    def finish(out_flat):
        if padded:
            out_flat = out_flat[:N]
        return out_flat.reshape(B, S, D)

    out_tile_bytes = tq * D * itemsize

    if table_bytes <= vmem_budget_bytes and V <= onehot_max_vocab:
        # ---- Path A: one-hot MXU gather ------------------------------------
        ids2d = flat_ids
        if padded:
            ids2d = jnp.pad(ids2d, (0, n_pad - N))  # pad with id 0 (valid row)
        ids2d = ids2d.reshape(n_pad, 1)

        onehot_bytes = tq * max(V, 128) * 4
        vmem_limit = int(min(
            capacity,
            max(32 << 20,
                2 * table_bytes + 2 * out_tile_bytes + 2 * onehot_bytes + (4 << 20))))

        out = pl.pallas_call(
            functools.partial(_embed_onehot_kernel, scale=scale),
            out_shape=jax.ShapeDtypeStruct((n_pad, D), embed_table.dtype),
            grid=(n_pad // tq,),
            in_specs=[
                pl.BlockSpec((tq, 1), lambda i: (i, 0)),      # ids tile (VMEM)
                pl.BlockSpec((V, D), lambda i: (0, 0)),       # table, DMA'd once
            ],
            out_specs=pl.BlockSpec((tq, D), lambda i: (i, 0)),
            compiler_params=pltpu.CompilerParams(
                dimension_semantics=("parallel",),
                vmem_limit_bytes=vmem_limit),
        )(ids2d, embed_table)
        return finish(out)

    if table_bytes <= vmem_budget_bytes:
        # ---- Path B: VMEM-resident table, per-row copy loop (large V) ------
        ids = flat_ids
        if padded:
            ids = jnp.pad(ids, (0, n_pad - N))
        vmem_limit = int(min(
            capacity,
            max(32 << 20, 2 * table_bytes + 2 * out_tile_bytes + (4 << 20))))
        # TODO(synk): for very long sequences switch the scalar-prefetched id
        #             array to per-tile SMEM blocks (SMEM pads 1D arrays to a
        #             power of two).
        out = pl.pallas_call(
            functools.partial(_embed_rows_vmem_kernel, tq=tq, scale=scale),
            out_shape=jax.ShapeDtypeStruct((n_pad, D), embed_table.dtype),
            grid_spec=pltpu.PrefetchScalarGridSpec(
                num_scalar_prefetch=1,                       # ids -> SMEM
                grid=(n_pad // tq,),
                in_specs=[pl.BlockSpec((V, D), lambda i, ids: (0, 0))],
                out_specs=pl.BlockSpec((tq, D), lambda i, ids: (i, 0)),
            ),
            compiler_params=pltpu.CompilerParams(
                dimension_semantics=("parallel",),
                vmem_limit_bytes=vmem_limit),
        )(ids, embed_table)
        return finish(out)

    # ---- Path C: HBM fallback with overlapped manual row DMAs --------------
    ids = flat_ids
    if padded:
        ids = jnp.pad(ids, (0, n_pad - N))
    out = pl.pallas_call(
        functools.partial(_embed_hbm_gather_kernel, tq=tq, scale=scale),
        out_shape=jax.ShapeDtypeStruct((n_pad, D), embed_table.dtype),
        grid_spec=pltpu.PrefetchScalarGridSpec(
            num_scalar_prefetch=1,                           # ids -> SMEM
            grid=(n_pad // tq,),
            in_specs=[pl.BlockSpec(memory_space=pl.ANY)],    # table stays put
            out_specs=pl.BlockSpec((tq, D), lambda i, ids: (i, 0)),
            scratch_shapes=[
                pltpu.VMEM((tq, D), embed_table.dtype),
                pltpu.SemaphoreType.DMA((_DMA_DEPTH,)),
            ],
        ),
        compiler_params=pltpu.CompilerParams(
            dimension_semantics=("parallel",)),
    )(ids, embed_table)
    return finish(out)


if __name__ == "__main__":
    # Small, deterministic setup consistent with the module's __init__:
    #   vocab_size=64, d_model=128, dropout_perc=0.1 (identity at eval)
    vocab_size, d_model = 64, 128
    batch, seq = 2, 8

    key = jax.random.PRNGKey(0)
    k_w, k_x = jax.random.split(key)

    # nn.Embedding weight ~ N(0, 1), shape (vocab_size, d_model)
    embed_table = jax.random.normal(k_w, (vocab_size, d_model), dtype=jnp.float32)
    token_ids = jax.random.randint(k_x, (batch, seq), 0, vocab_size, dtype=jnp.int32)

    ref = embed_table[token_ids.reshape(-1)].reshape(batch, seq, d_model) * math.sqrt(
        float(d_model))

    # Path A: one-hot MXU gather (default).
    out_a = jax.block_until_ready(embedding_layer_forward(token_ids, embed_table))
    # Path B: VMEM-resident row-copy loop (forced by disabling the one-hot gate).
    out_b = jax.block_until_ready(
        embedding_layer_forward(token_ids, embed_table, onehot_max_vocab=0))
    # Path C: HBM manual-DMA gather fallback (forced by a zero VMEM budget).
    out_c = jax.block_until_ready(
        embedding_layer_forward(token_ids, embed_table, vmem_budget_bytes=0))

    for name, out in (("onehot", out_a), ("vmem_rows", out_b), ("hbm_gather", out_c)):
        assert out.shape == (batch, seq, d_model), name
        assert jnp.allclose(out, ref, atol=1e-4, rtol=1e-4), f"mismatch vs reference: {name}"

    print("KERNEL_OK")
</pallas_src>

<mosaic_0001>
module attributes {stable_mosaic.version = 11 : i64} {
  func.func @_embed_onehot_kernel(%arg0: i32, %arg1: memref<16x1xi32, #tpu.memory_space<vmem>>, %arg2: memref<64x128xf32, #tpu.memory_space<vmem>>, %arg3: memref<16x128xf32, #tpu.memory_space<vmem>>) attributes {dimension_semantics = [#tpu.dimension_semantics<parallel>], iteration_bounds = array<i64: 1>, scalar_prefetch = 0 : i64, scratch_operands = 0 : i64, tpu.core_type = #tpu.core_type<tc>, window_params = [{transform_indices = @transform_0, window_bounds = array<i64: 16, 1>}, {pipeline_mode = #tpu.pipeline_mode<synchronous>, transform_indices = @transform_1, window_bounds = array<i64: 64, 128>}, {transform_indices = @transform_2, window_bounds = array<i64: 16, 128>}]} {
    %c0 = arith.constant 0 : index
    %c0_0 = arith.constant 0 : index
    %0 = vector.load %arg1[%c0, %c0_0] : memref<16x1xi32, #tpu.memory_space<vmem>>, vector<16x1xi32>
    %1 = tpu.iota {dimensions = array<i32: 1>} : vector<16x64xi32>
    %2 = vector.broadcast %0 : vector<16x1xi32> to vector<16x64xi32>
    %3 = arith.cmpi eq, %1, %2 : vector<16x64xi32>
    %4 = arith.extui %3 : vector<16x64xi1> to vector<16x64xi32>
    %5 = arith.sitofp %4 : vector<16x64xi32> to vector<16x64xf32>
    %c0_1 = arith.constant 0 : index
    %c0_2 = arith.constant 0 : index
    %6 = vector.load %arg2[%c0_1, %c0_2] : memref<64x128xf32, #tpu.memory_space<vmem>>, vector<64x128xf32>
    %cst = arith.constant dense<0.000000e+00> : vector<16x128xf32>
    %7 = tpu.matmul %5, %6, %cst {dimension_numbers = #tpu.dot_dimension_numbers<[1], [0], [0], [1], [0, 0, 1, 1], [], []>} : vector<16x64xf32>, vector<64x128xf32>, vector<16x128xf32> -> vector<16x128xf32>
    %cst_3 = arith.constant 11.3137083 : f32
    %8 = vector.broadcast %cst_3 : f32 to vector<16x128xf32>
    %9 = arith.mulf %7, %8 : vector<16x128xf32>
    %c0_4 = arith.constant 0 : index
    %c0_5 = arith.constant 0 : index
    %10 = vector.load %arg3[%c0_4, %c0_5] : memref<16x128xf32, #tpu.memory_space<vmem>>, vector<16x128xf32>
    tpu.vector_store %arg3[%c0_4, %c0_5], %9 {strides = array<i32>} : memref<16x128xf32, #tpu.memory_space<vmem>>, vector<16x128xf32>,
    return
  }
  func.func @transform_0(%arg0: i32) -> (i32, i32) {
    %c0_i32 = arith.constant 0 : i32
    %c0_i32_0 = arith.constant 0 : i32
    return %arg0, %c0_i32 : i32, i32
  }
  func.func @transform_1(%arg0: i32) -> (i32, i32) {
    %c0_i32 = arith.constant 0 : i32
    %c0_i32_0 = arith.constant 0 : i32
    %c0_i32_1 = arith.constant 0 : i32
    return %c0_i32, %c0_i32_0 : i32, i32
  }
  func.func @transform_2(%arg0: i32) -> (i32, i32) {
    %c0_i32 = arith.constant 0 : i32
    %c0_i32_0 = arith.constant 0 : i32
    return %arg0, %c0_i32 : i32, i32
  }
}

</mosaic_0001>

<llo_original>
// kernel: tpu_custom_call.1
$region0: #{tpu_custom_call.1}
  #allocation0 [shape = 'u32[]', space=smem, size = 0x4, offset = 0x4, fixed_abs, tag = 'smem constant byte address 0x4 - core index']
  #allocation1 [shape = 'u32[144,128]{1,0:T(1,128)}', space=vmem, size = 0x12000, scoped, tag = 'internal scratch']
  %s0 = inlined_call_operand.vmem [shape: s32[16,1], index: 0, kind: input, shape index: {}]
  %s1 = inlined_call_operand.hbm [shape: f32[64,128], index: 1, kind: input, shape index: {}]
  %s2 = inlined_call_operand.hbm [shape: f32[16,128], index: 2, kind: output, shape index: {}]
  %s3 = sld [smem:[#allocation0]]
  $region22: #{tpu_custom_call.1} parent=0
    _
  %s5 = ssub.s32 1, %s3
  %s6 = scalar_select 0, %s5, %s3
  $region1: #{tpu_custom_call.1} parent=0
    #allocation2 [shape = 'u8[32768]{0}', space=vmem, size = 0x8000, scoped, tag = 'input window, operand 1, single buffered']
    #allocation3 [shape = 's32[1]{0}', space=sflag, size = 0x4, scoped, tag = 'scoped memory for tpu_custom_call.1']
    #allocation4 [shape = 's32[1]{0}', space=sflag, size = 0x4, scoped, tag = 'scoped memory for tpu_custom_call.1']
    #allocation5 [shape = 'u8[8192]{0}', space=vmem, size = 0x2000, scoped, tag = 'output window, operand 0, single buffered']
    %7 = vsyncpa [#allocation3], 0
    %8 = vsyncpa [#allocation4], 0
    // Predicated region
    $region2: #{tpu_custom_call.1} parent=1 // pred_check
      _
    $region3: #{tpu_custom_call.1} parent=1 // pred_check_branch
      %10 = sbr.rel (0) target = $region5
    $region4: #{tpu_custom_call.1} parent=1 // pred_region
      _
    $region5: #{tpu_custom_call.1} parent=1 // pred_fallthru
      _
    // Predicated region
    $region6: #{tpu_custom_call.1} parent=1 // pred_check
      _
    $region7: #{tpu_custom_call.1} parent=1 // pred_check_branch
      %12 = sbr.rel (0) target = $region9
    $region8: #{tpu_custom_call.1} parent=1 // pred_region
      %s14 = ssub.s32 1024, 1024
      %15 = vsyncadd [#allocation3], %s14
      %s16 = sshll.u32 [#allocation2], 4
      %s17 = int_to_ptr.vmem [resolvable:$true] %s16
      %22 = dma.hbm_to_vmem [thread:$0]  %s1, 1024, %s17, [#allocation3], 128, 128, 8
    $region9: #{tpu_custom_call.1} parent=1 // pred_fallthru
      _
    // Predicated region
    $region10: #{tpu_custom_call.1} parent=1 // pred_check
      _
    $region11: #{tpu_custom_call.1} parent=1 // pred_check_branch
      %24 = sbr.rel (0) target = $region13
    $region12: #{tpu_custom_call.1} parent=1 // pred_region
      %25 = dma.done [#allocation3], 1024
    $region13: #{tpu_custom_call.1} parent=1 // pred_fallthru
      _
    %v26 = vld [vmem:[%s0] sm:$0xff]
    %v27 = vld [vmem:[%s0 + $0x8] sm:$0xff]
    %v28 = vlaneseq
    %v29 = vand.u32 %v28, 127
    %30 = vset.pattern.permute.xlu0 0
    %31 = vperm.xlu0 %30, %v26
    %v32 = vpop.permute.xlu0 %31
    %33 = vset.pattern.permute.xlu0 0
    %34 = vperm.xlu0 %33, %v27
    %v35 = vpop.permute.xlu0 %34
    %vm36 = vcmp.eq.s32.totalorder %v29, %v32
    %vm37 = vcmp.eq.s32.totalorder %v29, %v35
    %v38 = vsel %vm36, 1, 0
    %v39 = vsel %vm37, 1, 0
    %v40 = vcvt.s32.f32 %v38
    %v41 = vcvt.s32.f32 %v39
    %v42 = vld [vmem:[#allocation2] sm:$0xff]
    %v43 = vld [vmem:[#allocation2 + $0x8] sm:$0xff]
    %v44 = vld [vmem:[#allocation2 + $0x10] sm:$0xff]
    %v45 = vld [vmem:[#allocation2 + $0x18] sm:$0xff]
    %v46 = vld [vmem:[#allocation2 + $0x20] sm:$0xff]
    %v47 = vld [vmem:[#allocation2 + $0x28] sm:$0xff]
    %v48 = vld [vmem:[#allocation2 + $0x30] sm:$0xff]
    %v49 = vld [vmem:[#allocation2 + $0x38] sm:$0xff]
    %vm50 = vcmask 523264
    %v52 = vsel %vm50, %v40, 0
    %v55 = vsel %vm50, %v41, 0
    %57 = vmatprep.subr.mxu0 0.0
    %58 = vmatpush1.msra.mxu0 %v42
    %59 = vmatprep.subr.mxu0 0.0
    %60 = vmatpush1.msra.mxu0 %v43
    %61 = vmatprep.subr.mxu0 0.0
    %62 = vmatpush1.msra.mxu0 %v44
    %63 = vmatprep.subr.mxu0 0.0
    %64 = vmatpush1.msra.mxu0 %v45
    %65 = vmatprep.subr.mxu0 0.0
    %66 = vmatpush1.msra.mxu0 %v46
    %67 = vmatprep.subr.mxu0 0.0
    %68 = vmatpush1.msra.mxu0 %v47
    %69 = vmatprep.subr.mxu0 0.0
    %70 = vmatpush1.msra.mxu0 %v48
    %71 = vmatprep.subr.mxu0 0.0
    %72 = vmatpush1.msra.mxu0 %v49
    %73 = vmatprep.subr.mxu0 0.0
    %74 = vmatpush1.msra.mxu0 0.0
    %75 = vmatprep.subr.mxu0 0.0
    %76 = vmatpush1.msra.mxu0 0.0
    %77 = vmatprep.subr.mxu0 0.0
    %78 = vmatpush1.msra.mxu0 0.0
    %79 = vmatprep.subr.mxu0 0.0
    %80 = vmatpush1.msra.mxu0 0.0
    %81 = vmatprep.subr.mxu0 0.0
    %82 = vmatpush1.msra.mxu0 0.0
    %83 = vmatprep.subr.mxu0 0.0
    %84 = vmatpush1.msra.mxu0 0.0
    %85 = vmatprep.subr.mxu0 0.0
    %86 = vmatpush1.msra.mxu0 0.0
    %87 = vmatprep.subr.mxu0 0.0
    %88 = vmatpush1.msra.mxu0 0.0
    %89 = vmatprep.subr.mxu0 0.0
    %90 = vmatpush1.msra.mxu0 0.0
    %91 = vmatprep.subr.mxu0 0.0
    %92 = vmatpush1.msra.mxu0 0.0
    %93 = vmatprep.subr.mxu0 0.0
    %94 = vmatpush1.msra.mxu0 0.0
    %95 = vmatprep.subr.mxu0 0.0
    %96 = vmatpush1.msra.mxu0 0.0
    %97 = vmatprep.subr.mxu0 0.0
    %98 = vmatpush1.msra.mxu0 0.0
    %99 = vmatprep.subr.mxu0 0.0
    %100 = vmatpush1.msra.mxu0 0.0
    %101 = vmatprep.subr.mxu0 0.0
    %102 = vmatpush1.msra.mxu0 0.0
    %103 = vmatprep.subr.mxu0 0.0
    %104 = vmatpush1.msra.mxu0 0.0
    %105 = vmatprep.subr.mxu0 0.0
    %106 = vmatpush1.msra.mxu0 0.0
    %107 = vmatprep.subr.mxu0 0.0
    %108 = vmatpush1.msra.mxu0 0.0
    %109 = vmatprep.subr.mxu0 0.0
    %110 = vmatpush1.msra.mxu0 0.0
    %111 = vmatprep.subr.mxu0 0.0
    %112 = vmatpush1.msra.mxu0 0.0
    %113 = vmatprep.subr.mxu0 0.0
    %114 = vmatpush1.msra.mxu0 0.0
    %115 = vmatprep.subr.mxu0 0.0
    %116 = vmatpush1.msra.mxu0 0.0
    %117 = vmatprep.subr.mxu0 0.0
    %118 = vmatpush1.msra.mxu0 0.0
    %119 = vmatprep.subr.mxu0 0.0
    %120 = vmatpush1.msra.mxu0 0.0
    %121 = vmatprep.mubr.f32.mxu0 0.0
    %122 = vmatmul.mubr.f32.gmra.mrb[0].mxu0 %v52
    %v123 = vpop.f32.mrb[0].mxu0
    %v124 = vadd.f32 0.0, %v123
    %v125 = vpop.f32.mrb[0].mxu0
    %126 = vmatprep.mubr.f32.mxu0 0.0
    %127 = vmatmul.mubr.f32.gmra.mrb[0].mxu0 %v55
    %v128 = vpop.f32.mrb[0].mxu0
    %v129 = vadd.f32 0.0, %v128
    %v130 = vpop.f32.mrb[0].mxu0
    %131 = vdwg.mxu0
    %v132 = vmul.f32 %v124, 11.313708
    %v133 = vmul.f32 %v129, 11.313708
    %134 = vst [vmem:[#allocation5] sm:$0xff] %v132
    %135 = vst [vmem:[#allocation5 + $0x8] sm:$0xff] %v133
    // Predicated region
    $region14: #{tpu_custom_call.1} parent=1 // pred_check
      _
    $region15: #{tpu_custom_call.1} parent=1 // pred_check_branch
      %137 = sbr.rel (0) target = $region17
    $region16: #{tpu_custom_call.1} parent=1 // pred_region
      %s139 = ssub.s32 256, 256
      %140 = vsyncadd [#allocation4], %s139
      %s141 = sshll.u32 [#allocation5], 4
      %s142 = int_to_ptr.vmem [resolvable:$true] %s141
      %147 = dma.vmem_to_hbm [thread:$0]  %s142, 256, %s2, [#allocation4], 128, 128, 8
    $region17: #{tpu_custom_call.1} parent=1 // pred_fallthru
      _
    // Predicated region
    $region18: #{tpu_custom_call.1} parent=1 // pred_check
      _
    $region19: #{tpu_custom_call.1} parent=1 // pred_check_branch
      %149 = sbr.rel (0) target = $region21
    $region20: #{tpu_custom_call.1} parent=1 // pred_region
      %150 = dma.done [#allocation4], 256
    $region21: #{tpu_custom_call.1} parent=1 // pred_fallthru
      _
    %151 = vsyncpa [#allocation3], 1
    %152 = vsyncpa [#allocation4], 1

</llo_original>
